<compile_context>
chip_gen: v6e
topology: v6e:2x2x1
jax: 0.10.0
libtpu: 0.0.40
codegen_flags: <defaults>
</compile_context>

<pallas_src>
import math

import jax
import jax.numpy as jnp
from jax import lax
from jax.experimental import pallas as pl
from jax.experimental.pallas import tpu as pltpu


# Large-but-finite mask value (avoids -inf arithmetic inside the online softmax).
DEFAULT_MASK_VALUE = -0.7 * float(jnp.finfo(jnp.float32).max)


def _pick_tile(n: int, preferred: int, align: int) -> int:
    """Largest tile <= preferred that divides n and is `align`-aligned; else the full extent."""
    if n <= preferred:
        return n
    for t in range(preferred, align - 1, -1):
        if n % t == 0 and t % align == 0:
            return t
    return n  # full extent is always legal


# ---------------------------------------------------------------------------
# Tiled linear:  out = x @ W + b     (bf16 operands, f32 accumulation)
# ---------------------------------------------------------------------------
def _linear_kernel(x_ref, w_ref, b_ref, o_ref):
    acc = jnp.dot(x_ref[...], w_ref[...], preferred_element_type=jnp.float32)
    o_ref[...] = (acc + b_ref[...].astype(jnp.float32)).astype(o_ref.dtype)


def _linear(x, w, b, *, out_dtype, block_m=256, block_n=512):
    """x: (M, K), w: (K, N), b: (1, N).  2-D (M, N) grid; K kept whole per block so no
    accumulator scratch is needed.  Weight block is (K, tn) -> bounded VMEM footprint."""
    M, K = x.shape
    Kw, N = w.shape
    assert K == Kw
    tm = _pick_tile(M, block_m, 8)     # sublane-aligned (or full M)
    tn = _pick_tile(N, block_n, 128)   # lane-aligned (or full N)
    assert M % tm == 0 and N % tn == 0

    flops = 2 * M * K * N
    bytes_accessed = (M * K * x.dtype.itemsize
                      + (M // tm) * K * N * w.dtype.itemsize
                      + N * b.dtype.itemsize
                      + M * N * jnp.dtype(out_dtype).itemsize)

    return pl.pallas_call(
        _linear_kernel,
        out_shape=jax.ShapeDtypeStruct((M, N), out_dtype),
        grid_spec=pltpu.PrefetchScalarGridSpec(
            num_scalar_prefetch=0,
            grid=(M // tm, N // tn),
            in_specs=[
                pl.BlockSpec((tm, K), lambda i, j: (i, 0)),
                pl.BlockSpec((K, tn), lambda i, j: (0, j)),
                pl.BlockSpec((1, tn), lambda i, j: (0, j)),
            ],
            out_specs=pl.BlockSpec((tm, tn), lambda i, j: (i, j)),
        ),
        compiler_params=pltpu.CompilerParams(
            dimension_semantics=("parallel", "parallel")),
        cost_estimate=pl.CostEstimate(flops=flops, transcendentals=0,
                                      bytes_accessed=bytes_accessed),
    )(x, w, b)


# ---------------------------------------------------------------------------
# Flash-style causal attention over batched heads: q, k, v are (B, H, T, hd)
# ---------------------------------------------------------------------------
def _make_flash_kernel(tq: int, tk: int, hd: int, scale: float):
    assert tq == tk, "causal tile predicates assume square (tq == tk) tiles"

    def kernel(q_ref, k_ref, v_ref, o_ref, m_sc, l_sc, acc_sc):
        qi = pl.program_id(2)
        ki = pl.program_id(3)

        @pl.when(ki == 0)
        def _init():
            m_sc[...] = jnp.full_like(m_sc, -jnp.inf)
            l_sc[...] = jnp.zeros_like(l_sc)
            acc_sc[...] = jnp.zeros_like(acc_sc)

        def update(masked: bool):
            # Fold 1/sqrt(hd) into q: O(tq*hd) work instead of O(tq*tk).
            q = (q_ref[0, 0].astype(jnp.float32) * scale).astype(jnp.bfloat16)  # (tq, hd)
            k = k_ref[0, 0]                                                     # (tk, hd) bf16
            v = v_ref[0, 0]                                                     # (tk, hd) bf16

            # q @ k^T by contracting the last dims -- no explicit transpose (XLU-free).
            s = lax.dot_general(q, k, (((1,), (1,)), ((), ())),
                                preferred_element_type=jnp.float32)             # (tq, tk) f32

            if masked:
                # Causal mask only exists on the diagonal tile.
                rows = lax.broadcasted_iota(jnp.int32, (tq, tk), 0)
                cols = lax.broadcasted_iota(jnp.int32, (tq, tk), 1)
                s = jnp.where(rows >= cols, s, DEFAULT_MASK_VALUE)

            # Online-softmax update (all f32).
            m_prev = m_sc[...]                                                  # (tq, 1)
            m_new = jnp.maximum(m_prev, jnp.max(s, axis=-1, keepdims=True))
            alpha = jnp.exp(m_prev - m_new)
            p = jnp.exp(s - m_new)                                              # (tq, tk)
            l_sc[...] = alpha * l_sc[...] + jnp.sum(p, axis=-1, keepdims=True)
            acc_sc[...] = alpha * acc_sc[...] + jnp.dot(
                p.astype(jnp.bfloat16), v, preferred_element_type=jnp.float32)
            m_sc[...] = m_new

        # Off-diagonal (fully visible) key tiles: no mask work at all.
        @pl.when(ki < qi)
        def _off_diag():
            update(masked=False)

        # Diagonal tile: apply the triangular mask.
        @pl.when(ki == qi)
        def _diag():
            update(masked=True)

        # Key tiles with ki > qi are entirely above the diagonal: skipped, and their
        # k/v index maps alias the qi block so no new DMA is issued for them.

        @pl.when(ki == pl.num_programs(3) - 1)
        def _finalize():
            inv_l = pl.reciprocal(l_sc[...], approx=True)
            o_ref[0, 0] = (acc_sc[...] * inv_l).astype(o_ref.dtype)

    return kernel


def _flash_attention(q, k, v, *, block_q=512):
    B, H, T, hd = q.shape
    tq = tk = _pick_tile(T, block_q, 8)
    assert T % tq == 0
    num_q = T // tq
    num_k = T // tk
    scale = 1.0 / math.sqrt(hd)

    kernel = _make_flash_kernel(tq, tk, hd, scale)

    # Causal: roughly half of the full QK^T / PV work.
    flops = 2 * B * H * T * T * hd          # ~ (2 matmuls) * (T*T/2 causal) * 2 flops
    transcendentals = B * H * T * T // 2    # exp
    bytes_accessed = 4 * B * H * T * hd * q.dtype.itemsize

    # k/v index maps clamp ki to qi: skipped upper-triangular steps reuse the block that
    # is already resident, so they cost neither DMA nor compute.
    q_map = lambda b, h, qi, ki: (b, h, qi, 0)
    kv_map = lambda b, h, qi, ki: (b, h, jnp.minimum(ki, qi), 0)
    o_map = lambda b, h, qi, ki: (b, h, qi, 0)

    return pl.pallas_call(
        kernel,
        out_shape=jax.ShapeDtypeStruct((B, H, T, hd), q.dtype),
        grid_spec=pltpu.PrefetchScalarGridSpec(
            num_scalar_prefetch=0,
            grid=(B, H, num_q, num_k),
            in_specs=[
                pl.BlockSpec((1, 1, tq, hd), q_map),
                pl.BlockSpec((1, 1, tk, hd), kv_map),
                pl.BlockSpec((1, 1, tk, hd), kv_map),
            ],
            out_specs=pl.BlockSpec((1, 1, tq, hd), o_map),
            scratch_shapes=[
                pltpu.VMEM((tq, 1), jnp.float32),    # running max
                pltpu.VMEM((tq, 1), jnp.float32),    # running denom
                pltpu.VMEM((tq, hd), jnp.float32),   # output accumulator
            ],
        ),
        compiler_params=pltpu.CompilerParams(
            dimension_semantics=("parallel", "parallel", "parallel", "arbitrary")),
        cost_estimate=pl.CostEstimate(flops=flops, transcendentals=transcendentals,
                                      bytes_accessed=bytes_accessed),
    )(q, k, v)


# ---------------------------------------------------------------------------
# Full module forward
# ---------------------------------------------------------------------------
def causal_self_attention(x, w_attn, b_attn, w_proj, b_proj, *, n_head: int,
                          block_m: int = 256, block_n: int = 512, block_q: int = 512):
    """x: (B, T, C) f32.  w_attn: (C, 3C), b_attn: (1, 3C), w_proj: (C, C),
    b_proj: (1, C).  Returns (B, T, C) in x.dtype."""
    B, T, C = x.shape
    assert C % n_head == 0
    hd = C // n_head

    # bf16 MXU operands; accumulation stays f32 inside the kernels.
    x_bf = x.astype(jnp.bfloat16)
    w_attn_bf = w_attn.astype(jnp.bfloat16)
    w_proj_bf = w_proj.astype(jnp.bfloat16)

    # --- QKV projection ---
    qkv = _linear(x_bf.reshape(B * T, C), w_attn_bf, b_attn,
                  out_dtype=jnp.bfloat16, block_m=block_m, block_n=block_n)   # (B*T, 3C)

    # Layout plumbing (outside the kernels): split heads into a batched leading axis.
    qkv = qkv.reshape(B, T, 3, n_head, hd)
    q = jnp.transpose(qkv[:, :, 0], (0, 2, 1, 3))                   # (B, H, T, hd)
    k = jnp.transpose(qkv[:, :, 1], (0, 2, 1, 3))
    v = jnp.transpose(qkv[:, :, 2], (0, 2, 1, 3))

    # --- causal flash attention ---
    y = _flash_attention(q, k, v, block_q=block_q)                  # (B, H, T, hd) bf16

    # --- output projection ---
    y = jnp.transpose(y, (0, 2, 1, 3)).reshape(B * T, C)
    out = _linear(y, w_proj_bf, b_proj, out_dtype=x.dtype,
                  block_m=block_m, block_n=block_n)
    return out.reshape(B, T, C)


def _reference(x, w_attn, b_attn, w_proj, b_proj, n_head):
    """Pure-JAX f32 reference mirroring the PyTorch module semantics."""
    B, T, C = x.shape
    hd = C // n_head
    qkv = x @ w_attn + b_attn[0]
    q, k, v = jnp.split(qkv, 3, axis=-1)
    q = q.reshape(B, T, n_head, hd).transpose(0, 2, 1, 3)
    k = k.reshape(B, T, n_head, hd).transpose(0, 2, 1, 3)
    v = v.reshape(B, T, n_head, hd).transpose(0, 2, 1, 3)
    s = jnp.einsum("bhqd,bhkd->bhqk", q, k) / math.sqrt(hd)
    mask = jnp.tril(jnp.ones((T, T), dtype=bool))
    s = jnp.where(mask, s, -jnp.inf)
    p = jax.nn.softmax(s, axis=-1)
    y = jnp.einsum("bhqk,bhkd->bhqd", p, v)
    y = y.transpose(0, 2, 1, 3).reshape(B, T, C)
    return y @ w_proj + b_proj[0]


if __name__ == "__main__":
    # Small config consistent with the module: n_embd % n_head == 0.
    B, T, C, n_head = 2, 8, 32, 4

    key = jax.random.PRNGKey(0)
    kx, k1, k2, k3, k4 = jax.random.split(key, 5)

    x = jax.random.normal(kx, (B, T, C), dtype=jnp.float32)

    # PyTorch Linear-style uniform +-1/sqrt(fan_in); stored as (in, out) so kernels
    # compute x @ W + b.
    bound = 1.0 / math.sqrt(C)
    w_attn = jax.random.uniform(k1, (C, 3 * C), jnp.float32, -bound, bound)
    b_attn = jax.random.uniform(k2, (1, 3 * C), jnp.float32, -bound, bound)
    w_proj = jax.random.uniform(k3, (C, C), jnp.float32, -bound, bound)
    b_proj = jax.random.uniform(k4, (1, C), jnp.float32, -bound, bound)

    out = causal_self_attention(x, w_attn, b_attn, w_proj, b_proj, n_head=n_head)
    out = jax.block_until_ready(out)

    ref = _reference(x, w_attn, b_attn, w_proj, b_proj, n_head)
    assert out.shape == (B, T, C)
    # bf16 MXU operands + approx reciprocal => loosened tolerance vs the f32 reference.
    assert jnp.allclose(out, ref, atol=3e-2, rtol=3e-2), "mismatch vs reference"

    print("KERNEL_OK")
</pallas_src>

<mosaic_0001>
module attributes {stable_mosaic.version = 11 : i64} {
  func.func @_linear_kernel(%arg0: i32, %arg1: i32, %arg2: memref<16x32xbf16, #tpu.memory_space<vmem>>, %arg3: memref<32x96xbf16, #tpu.memory_space<vmem>>, %arg4: memref<1x96xf32, #tpu.memory_space<vmem>>, %arg5: memref<16x96xbf16, #tpu.memory_space<vmem>>) attributes {dimension_semantics = [#tpu.dimension_semantics<parallel>, #tpu.dimension_semantics<parallel>], iteration_bounds = array<i64: 1, 1>, scalar_prefetch = 0 : i64, scratch_operands = 0 : i64, tpu.core_type = #tpu.core_type<tc>, window_params = [{transform_indices = @transform_0, window_bounds = array<i64: 16, 32>}, {transform_indices = @transform_1, window_bounds = array<i64: 32, 96>}, {transform_indices = @transform_2, window_bounds = array<i64: 1, 96>}, {transform_indices = @transform_3, window_bounds = array<i64: 16, 96>}]} {
    %c0 = arith.constant 0 : index
    %c0_0 = arith.constant 0 : index
    %0 = vector.load %arg2[%c0, %c0_0] : memref<16x32xbf16, #tpu.memory_space<vmem>>, vector<16x32xbf16>
    %c0_1 = arith.constant 0 : index
    %c0_2 = arith.constant 0 : index
    %1 = vector.load %arg3[%c0_1, %c0_2] : memref<32x96xbf16, #tpu.memory_space<vmem>>, vector<32x96xbf16>
    %cst = arith.constant dense<0.000000e+00> : vector<16x96xf32>
    %2 = tpu.matmul %0, %1, %cst {dimension_numbers = #tpu.dot_dimension_numbers<[1], [0], [0], [1], [0, 0, 1, 1], [], []>} : vector<16x32xbf16>, vector<32x96xbf16>, vector<16x96xf32> -> vector<16x96xf32>
    %c0_3 = arith.constant 0 : index
    %c0_4 = arith.constant 0 : index
    %3 = vector.load %arg4[%c0_3, %c0_4] : memref<1x96xf32, #tpu.memory_space<vmem>>, vector<1x96xf32>
    %4 = vector.broadcast %3 : vector<1x96xf32> to vector<16x96xf32>
    %5 = arith.addf %2, %4 : vector<16x96xf32>
    %6 = arith.truncf %5 : vector<16x96xf32> to vector<16x96xbf16>
    %c0_5 = arith.constant 0 : index
    %c0_6 = arith.constant 0 : index
    %7 = vector.load %arg5[%c0_5, %c0_6] : memref<16x96xbf16, #tpu.memory_space<vmem>>, vector<16x96xbf16>
    tpu.vector_store %arg5[%c0_5, %c0_6], %6 {strides = array<i32>} : memref<16x96xbf16, #tpu.memory_space<vmem>>, vector<16x96xbf16>,
    return
  }
  func.func @transform_0(%arg0: i32, %arg1: i32) -> (i32, i32) {
    %c0_i32 = arith.constant 0 : i32
    %c0_i32_0 = arith.constant 0 : i32
    return %arg0, %c0_i32 : i32, i32
  }
  func.func @transform_1(%arg0: i32, %arg1: i32) -> (i32, i32) {
    %c0_i32 = arith.constant 0 : i32
    %c0_i32_0 = arith.constant 0 : i32
    return %c0_i32, %arg1 : i32, i32
  }
  func.func @transform_2(%arg0: i32, %arg1: i32) -> (i32, i32) {
    %c0_i32 = arith.constant 0 : i32
    %c0_i32_0 = arith.constant 0 : i32
    return %c0_i32, %arg1 : i32, i32
  }
  func.func @transform_3(%arg0: i32, %arg1: i32) -> (i32, i32) {
    %c0_i32 = arith.constant 0 : i32
    return %arg0, %arg1 : i32, i32
  }
}

</mosaic_0001>

<llo_original>
// kernel: tpu_custom_call.1
$region0: #{tpu_custom_call.1}
  #allocation0 [shape = 'u32[]', space=smem, size = 0x4, offset = 0x4, fixed_abs, tag = 'smem constant byte address 0x4 - core index']
  #allocation1 [shape = 'u32[144,128]{1,0:T(1,128)}', space=vmem, size = 0x12000, scoped, tag = 'internal scratch']
  %s0 = inlined_call_operand.hbm [shape: bf16[16,32], index: 0, kind: input, shape index: {}]
  %s1 = inlined_call_operand.hbm [shape: bf16[32,96], index: 1, kind: input, shape index: {}]
  %s2 = inlined_call_operand.vmem [shape: f32[1,96], index: 2, kind: input, shape index: {}]
  %s3 = inlined_call_operand.hbm [shape: bf16[16,96], index: 3, kind: output, shape index: {}]
  %s4 = sld [smem:[#allocation0]]
  $region30: #{tpu_custom_call.1} parent=0
    _
  %s6 = ssub.s32 1, %s4
  %s7 = scalar_select 0, %s6, %s4
  $region1: #{tpu_custom_call.1} parent=0
    #allocation2 [shape = 'u8[4096]{0}', space=vmem, size = 0x1000, scoped, tag = 'input window, operand 0, single buffered']
    #allocation3 [shape = 's32[1]{0}', space=sflag, size = 0x4, scoped, tag = 'scoped memory for tpu_custom_call.1']
    #allocation4 [shape = 's32[1]{0}', space=sflag, size = 0x4, scoped, tag = 'scoped memory for tpu_custom_call.1']
    #allocation5 [shape = 'u8[8192]{0}', space=vmem, size = 0x2000, scoped, tag = 'input window, operand 1, single buffered']
    #allocation6 [shape = 's32[1]{0}', space=sflag, size = 0x4, scoped, tag = 'scoped memory for tpu_custom_call.1']
    #allocation7 [shape = 'u8[4096]{0}', space=vmem, size = 0x1000, scoped, tag = 'output window, operand 0, single buffered']
    %8 = vsyncpa [#allocation3], 0
    %9 = vsyncpa [#allocation6], 0
    %10 = vsyncpa [#allocation4], 0
    // Predicated region
    $region2: #{tpu_custom_call.1} parent=1 // pred_check
      _
    $region3: #{tpu_custom_call.1} parent=1 // pred_check_branch
      %12 = sbr.rel (0) target = $region5
    $region4: #{tpu_custom_call.1} parent=1 // pred_region
      %s14 = ssub.s32 128, 128
      %15 = vsyncadd [#allocation3], %s14
      %s16 = sshll.u32 [#allocation2], 4
      %s17 = int_to_ptr.vmem [resolvable:$true] %s16
      %22 = dma.hbm_to_vmem [thread:$0]  %s0, 128, %s17, [#allocation3], 64, 64, 4
    $region5: #{tpu_custom_call.1} parent=1 // pred_fallthru
      _
    // Predicated region
    $region6: #{tpu_custom_call.1} parent=1 // pred_check
      _
    $region7: #{tpu_custom_call.1} parent=1 // pred_check_branch
      %24 = sbr.rel (0) target = $region9
    $region8: #{tpu_custom_call.1} parent=1 // pred_region
      %s26 = ssub.s32 256, 256
      %27 = vsyncadd [#allocation6], %s26
      %s28 = sshll.u32 [#allocation5], 4
      %s29 = int_to_ptr.vmem [resolvable:$true] %s28
      %34 = dma.hbm_to_vmem [thread:$0]  %s1, 256, %s29, [#allocation6], 64, 64, 4
    $region9: #{tpu_custom_call.1} parent=1 // pred_fallthru
      _
    // Predicated region
    $region10: #{tpu_custom_call.1} parent=1 // pred_check
      _
    $region11: #{tpu_custom_call.1} parent=1 // pred_check_branch
      %36 = sbr.rel (0) target = $region13
    $region12: #{tpu_custom_call.1} parent=1 // pred_region
      _
    $region13: #{tpu_custom_call.1} parent=1 // pred_fallthru
      _
    // Predicated region
    $region14: #{tpu_custom_call.1} parent=1 // pred_check
      _
    $region15: #{tpu_custom_call.1} parent=1 // pred_check_branch
      %38 = sbr.rel (0) target = $region17
    $region16: #{tpu_custom_call.1} parent=1 // pred_region
      %39 = dma.done [#allocation3], 128
    $region17: #{tpu_custom_call.1} parent=1 // pred_fallthru
      _
    // Predicated region
    $region18: #{tpu_custom_call.1} parent=1 // pred_check
      _
    $region19: #{tpu_custom_call.1} parent=1 // pred_check_branch
      %41 = sbr.rel (0) target = $region21
    $region20: #{tpu_custom_call.1} parent=1 // pred_region
      %42 = dma.done [#allocation6], 256
    $region21: #{tpu_custom_call.1} parent=1 // pred_fallthru
      _
    %v44 = vld [vmem:[#allocation2] sm:$0xf]
    %v45 = vld [vmem:[#allocation2 + $0x4] sm:$0xf]
    %v46 = vld [vmem:[#allocation5] sm:$0xf]
    %v47 = vld [vmem:[#allocation5 + $0x4] sm:$0xf]
    %v48 = vld [vmem:[#allocation5 + $0x8] sm:$0xf]
    %v49 = vld [vmem:[#allocation5 + $0xc] sm:$0xf]
    %v50 = vld [vmem:[%s2] sm:$0x1]
    %v52 = vlaneseq
    %v53 = vshrl.u32 %v52, 7
    %v54 = vsub.s32 0, %v53
    %v55 = vrot.slane %v50, %v54
    %v59 = vunpack.c.l.b16 %v44
    %v60 = vunpack.c.l.b16 %v45
    %v61 = vpack.c.b16 %v60, %v59
    %v66 = vunpack.c.l.b16 %v46
    %v67 = vunpack.c.l.b16 %v47
    %v68 = vunpack.c.l.b16 %v48
    %v69 = vunpack.c.l.b16 %v49
    %v70 = vpack.c.b16 %v67, %v66
    %v71 = vpack.c.b16 %v69, %v68
    %vm74 = vcmask 261120
    %v76 = vsel %vm74, %v61, 0
    %78 = vmatprep.subr.bf16.mxu0 0
    %79 = vmatpush1.bf16.msra.mxu0 0
    %80 = vmatprep.subr.bf16.mxu0 0
    %81 = vmatpush1.bf16.msra.mxu0 0
    %82 = vmatprep.subr.bf16.mxu0 0
    %83 = vmatpush1.bf16.msra.mxu0 0
    %84 = vmatprep.subr.bf16.mxu0 0
    %85 = vmatpush1.bf16.msra.mxu0 0
    %86 = vmatprep.subr.bf16.mxu0 0
    %87 = vmatpush1.bf16.msra.mxu0 0
    %88 = vmatprep.subr.bf16.mxu0 0
    %89 = vmatpush1.bf16.msra.mxu0 0
    %90 = vmatprep.subr.bf16.mxu0 0
    %91 = vmatpush1.bf16.msra.mxu0 %v71
    %92 = vmatprep.subr.bf16.mxu0 0
    %93 = vmatpush1.bf16.msra.mxu0 %v70
    %94 = vmatprep.subr.bf16.mxu0 0
    %95 = vmatpush2.bf16.msra.mxu0 0
    %96 = vmatprep.subr.bf16.mxu0 0
    %97 = vmatpush2.bf16.msra.mxu0 0
    %98 = vmatprep.subr.bf16.mxu0 0
    %99 = vmatpush2.bf16.msra.mxu0 0
    %100 = vmatprep.subr.bf16.mxu0 0
    %101 = vmatpush2.bf16.msra.mxu0 0
    %102 = vmatprep.subr.bf16.mxu0 0
    %103 = vmatpush2.bf16.msra.mxu0 0
    %104 = vmatprep.subr.bf16.mxu0 0
    %105 = vmatpush2.bf16.msra.mxu0 0
    %106 = vmatprep.subr.bf16.mxu0 0
    %107 = vmatpush2.bf16.msra.mxu0 0
    %108 = vmatprep.subr.bf16.mxu0 0
    %109 = vmatpush2.bf16.msra.mxu0 0
    %110 = vmatprep.mubr.bf16.mxu0 0
    %111 = vmatmul.mubr.bf16.gmra.mxu0 %v76
    %v112 = vpop.f32.mrf.mxu0
    %v113 = vadd.f32 %v55, %v112
    %v114 = vpop.f32.mrf.mxu0
    %v115 = vpop.f32.mrf.mxu0
    %v116 = vadd.f32 %v55, %v115
    %v117 = vpop.f32.mrf.mxu0
    %118 = vdwg.mxu0
    %v119 = vpack.c.bf16 %v116, %v113
    %v121 = vunpack.c.l.b16 %v119
    %v122 = vunpack.c.h.b16 %v119
    %v123 = vpack.c.b16 %v121, %v121
    %v124 = vpack.c.b16 %v122, %v122
    %vm127 = vcmask 781312
    %128 = vst.msk [vmem:[#allocation7] sm:$0xf] %vm127, %v123
    %129 = vst.msk [vmem:[#allocation7 + $0x4] sm:$0xf] %vm127, %v124
    // Predicated region
    $region22: #{tpu_custom_call.1} parent=1 // pred_check
      _
    $region23: #{tpu_custom_call.1} parent=1 // pred_check_branch
      %131 = sbr.rel (0) target = $region25
    $region24: #{tpu_custom_call.1} parent=1 // pred_region
      %s133 = ssub.s32 128, 128
      %134 = vsyncadd [#allocation4], %s133
      %s135 = sshll.u32 [#allocation7], 4
      %s136 = int_to_ptr.vmem [resolvable:$true] %s135
      %141 = dma.vmem_to_hbm [thread:$0]  %s136, 128, %s3, [#allocation4], 64, 64, 4
    $region25: #{tpu_custom_call.1} parent=1 // pred_fallthru
      _
    // Predicated region
    $region26: #{tpu_custom_call.1} parent=1 // pred_check
      _
    $region27: #{tpu_custom_call.1} parent=1 // pred_check_branch
      %143 = sbr.rel (0) target = $region29
    $region28: #{tpu_custom_call.1} parent=1 // pred_region
      %144 = dma.done [#allocation4], 128
    $region29: #{tpu_custom_call.1} parent=1 // pred_fallthru
      _
    %145 = vsyncpa [#allocation3], 1
    %146 = vsyncpa [#allocation6], 1
    %147 = vsyncpa [#allocation4], 1

</llo_original>
